<compile_context>
chip_gen: v6e
topology: v6e:2x2x1
jax: 0.10.0
libtpu: 0.0.40
codegen_flags: <defaults>
</compile_context>

<pallas_src>
import jax
import jax.numpy as jnp
from jax.experimental import pallas as pl
from jax.experimental.pallas import tpu as pltpu


def _round_up(x: int, m: int) -> int:
    return ((x + m - 1) // m) * m


# ----------------------------- kernels -------------------------------------


def _decoder_kernel_inplace(h_ref, w_ref, b_ref, o_ref):
    """f32 output: accumulate directly into the VMEM-resident output tile."""
    k = pl.program_id(2)

    @pl.when(k == 0)
    def _init():
        o_ref[...] = jnp.zeros_like(o_ref)

    o_ref[...] += jnp.dot(h_ref[...], w_ref[...], preferred_element_type=jnp.float32)

    @pl.when(k == pl.num_programs(2) - 1)
    def _finalize():
        o_ref[...] = jax.nn.sigmoid(o_ref[...] + b_ref[...])  # bias bcast (1, TN)


def _decoder_kernel_scratch(h_ref, w_ref, b_ref, o_ref, acc_ref):
    """Non-f32 output: f32 scratch accumulator, cast only on the final store."""
    k = pl.program_id(2)

    @pl.when(k == 0)
    def _init():
        acc_ref[...] = jnp.zeros_like(acc_ref)

    acc_ref[...] += jnp.dot(h_ref[...], w_ref[...], preferred_element_type=jnp.float32)

    @pl.when(k == pl.num_programs(2) - 1)
    def _finalize():
        o_ref[...] = jax.nn.sigmoid(acc_ref[...] + b_ref[...]).astype(o_ref.dtype)


# ----------------------------- wrapper --------------------------------------


def make_mlp_decoder(
    w_t,
    b,
    *,
    compute_dtype=jnp.bfloat16,
    out_dtype=jnp.float32,
    tm_cap=512,
    tk_cap=2048,
    tn_cap=2048,
):
    """Build an `apply(h)` closure for sigmoid(h @ w_t + b).

    Weight/bias are padded + cast to `compute_dtype` once, here (hoisted out
    of the hot path). Accumulation, bias add and sigmoid are always f32.
    """
    H, C = w_t.shape
    in_isz = jnp.dtype(compute_dtype).itemsize
    out_isz = jnp.dtype(out_dtype).itemsize
    sub_align = {1: 32, 2: 16}.get(in_isz, 8)  # sublane packing per dtype

    # --- per-generation VMEM budget (v7x: 64 MiB phys, v5e/v6e: 128 MiB) ----
    try:
        phys = int(getattr(pltpu.get_tpu_info(), "vmem_capacity_bytes", 64 << 20))
    except Exception:
        phys = 64 << 20  # conservative fallback (fits every generation)
    budget = int(phys * 0.65)       # working-set target for tile selection
    vmem_limit = int(phys * 0.75)   # raise scoped limit, stay under physical

    use_scratch = jnp.dtype(out_dtype) != jnp.dtype(jnp.float32)

    def working_set(tm, tk, tn):
        ws = 2 * tm * tk * in_isz        # h tiles (double-buffered)
        ws += 2 * tk * tn * in_isz       # weight tiles
        ws += 2 * 8 * tn * 4             # bias tile (padded to 8 sublanes)
        ws += 2 * tm * tn * out_isz      # output tiles
        if use_scratch:
            ws += tm * tn * 4            # f32 accumulator
        return ws

    Hp0 = _round_up(H, 128)
    Cp0 = _round_up(C, 128)

    # Operand-size-aware loop structure:
    #  * small/medium nclass -> TN covers all classes (class axis collapses,
    #    activations stream exactly once, small weight stripe is re-streamed).
    #  * large nclass -> cap TN; TM is maximized per call so the big weight
    #    streams ~once and the (small) activations are re-streamed instead.
    TN = Cp0 if Cp0 <= tn_cap else tn_cap
    TK = min(Hp0, tk_cap)
    while working_set(tm_cap, TK, TN) > budget and TK > 128:
        TK = max(128, _round_up(TK // 2, 128))
    while working_set(tm_cap, TK, TN) > budget and TN > 128:
        TN = max(128, _round_up(TN // 2, 128))

    Hp = _round_up(H, TK)
    Cp = _round_up(C, TN)

    # Pre-pad + pre-cast weight / bias ONCE (zero padding is exact for matmul).
    w_p = jnp.pad(jnp.asarray(w_t).astype(compute_dtype), ((0, Hp - H), (0, Cp - C)))
    b_p = jnp.pad(jnp.asarray(b).astype(jnp.float32), (0, Cp - C)).reshape(1, Cp)

    @jax.jit
    def _apply(h, w_pad, b_pad):
        B = h.shape[0]
        assert h.shape == (B, H)

        # Batch tile: aligned for dtype packing, bounded padding waste.
        TM = min(tm_cap, _round_up(B, sub_align))
        while working_set(TM, TK, TN) > budget and TM > sub_align:
            TM = max(sub_align, _round_up(TM // 2, sub_align))

        n_j = Cp // TN
        # v7x megacore: ensure >= 2 tiles on a 'parallel' axis when possible.
        if (
            n_j == 1
            and B > TM // 2
            and TM // 2 >= sub_align
            and (TM // 2) % sub_align == 0
        ):
            TM //= 2

        Bp = _round_up(B, TM)
        n_i = Bp // TM

        h_p = jnp.pad(h.astype(compute_dtype), ((0, Bp - B), (0, Hp - H)))

        grid = (n_j, n_i, Hp // TK)  # (class tiles, batch tiles, reduction)

        cost = pl.CostEstimate(
            flops=2 * Bp * Hp * Cp,
            transcendentals=Bp * Cp,
            bytes_accessed=(
                Bp * Hp * in_isz * n_j      # activations (streamed per class tile)
                + Hp * Cp * in_isz * n_i    # weight (streamed per batch tile)
                + Cp * 4                    # bias
                + Bp * Cp * out_isz         # output
            ),
        )

        if use_scratch:
            kernel = _decoder_kernel_scratch
            scratch = [pltpu.VMEM((TM, TN), jnp.float32)]
        else:
            kernel = _decoder_kernel_inplace
            scratch = []

        out_p = pl.pallas_call(
            kernel,
            out_shape=jax.ShapeDtypeStruct((Bp, Cp), out_dtype),
            grid_spec=pltpu.PrefetchScalarGridSpec(
                num_scalar_prefetch=0,
                grid=grid,
                in_specs=[
                    # activations: vary with batch (i) and reduction (k)
                    pl.BlockSpec((TM, TK), lambda j, i, k: (i, k)),
                    # weight stripe: varies with reduction (k) and class (j)
                    pl.BlockSpec((TK, TN), lambda j, i, k: (k, j)),
                    # bias: tiny (1, TN)
                    pl.BlockSpec((1, TN), lambda j, i, k: (0, j)),
                ],
                out_specs=pl.BlockSpec((TM, TN), lambda j, i, k: (i, j)),
                scratch_shapes=scratch,
            ),
            compiler_params=pltpu.CompilerParams(
                dimension_semantics=("parallel", "parallel", "arbitrary"),
                vmem_limit_bytes=vmem_limit,
            ),
            cost_estimate=cost,
        )(h_p, w_pad, b_pad)

        return out_p[:B, :C]

    def apply(h):
        return _apply(h, w_p, b_p)

    return apply


def reference(h, w_t, b):
    return jax.nn.sigmoid(h @ w_t + b)


if __name__ == "__main__":
    key = jax.random.PRNGKey(0)
    k_h, k_w, k_b = jax.random.split(key, 3)

    batch, hdim, nclass = 8, 32, 16

    h = jax.random.normal(k_h, (batch, hdim), dtype=jnp.float32)
    # torch Linear weight is (nclass, hdim); stored transposed: (hdim, nclass).
    w_t = jax.random.normal(k_w, (hdim, nclass), dtype=jnp.float32) * (
        1.0 / jnp.sqrt(hdim)
    )
    b = jax.random.normal(k_b, (nclass,), dtype=jnp.float32) * 0.01

    ref = reference(h, w_t, b)

    # Full-precision path: tight against the reference.
    dec_f32 = make_mlp_decoder(w_t, b, compute_dtype=jnp.float32)
    out = jax.block_until_ready(dec_f32(h))
    assert out.shape == (batch, nclass)
    assert jnp.allclose(out, ref, atol=1e-5, rtol=1e-5)

    # Default bandwidth-optimized path: bf16 MXU inputs, f32 accumulate/sigmoid.
    dec_bf16 = make_mlp_decoder(w_t, b)
    out_bf16 = jax.block_until_ready(dec_bf16(h))
    assert out_bf16.shape == (batch, nclass)
    assert jnp.allclose(out_bf16, ref, atol=1e-2, rtol=1e-2)

    print("KERNEL_OK")
</pallas_src>

<mosaic_0001>
module attributes {stable_mosaic.version = 11 : i64} {
  func.func @_decoder_kernel_inplace(%arg0: i32, %arg1: i32, %arg2: i32, %arg3: memref<8x128xf32, #tpu.memory_space<vmem>>, %arg4: memref<128x128xf32, #tpu.memory_space<vmem>>, %arg5: memref<1x128xf32, #tpu.memory_space<vmem>>, %arg6: memref<8x128xf32, #tpu.memory_space<vmem>>) attributes {dimension_semantics = [#tpu.dimension_semantics<parallel>, #tpu.dimension_semantics<parallel>, #tpu.dimension_semantics<arbitrary>], iteration_bounds = array<i64: 1, 1, 1>, scalar_prefetch = 0 : i64, scratch_operands = 0 : i64, tpu.core_type = #tpu.core_type<tc>, window_params = [{transform_indices = @transform_0, window_bounds = array<i64: 8, 128>}, {transform_indices = @transform_1, window_bounds = array<i64: 128, 128>}, {transform_indices = @transform_2, window_bounds = array<i64: 1, 128>}, {transform_indices = @transform_3, window_bounds = array<i64: 8, 128>}]} {
    %c0_i32 = arith.constant 0 : i32
    %0 = arith.cmpi eq, %arg2, %c0_i32 : i32
    %1 = arith.extui %0 : i1 to i32
    %c0_i32_0 = arith.constant 0 : i32
    %2 = arith.cmpi ne, %1, %c0_i32_0 : i32
    scf.if %2 {
      %cst_10 = arith.constant 0.000000e+00 : f32
      %12 = vector.broadcast %cst_10 : f32 to vector<8x128xf32>
      %c0_11 = arith.constant 0 : index
      %c0_12 = arith.constant 0 : index
      %13 = vector.load %arg6[%c0_11, %c0_12] : memref<8x128xf32, #tpu.memory_space<vmem>>, vector<8x128xf32>
      tpu.vector_store %arg6[%c0_11, %c0_12], %12 {strides = array<i32>} : memref<8x128xf32, #tpu.memory_space<vmem>>, vector<8x128xf32>,
    } else {
    }
    %c0 = arith.constant 0 : index
    %c0_1 = arith.constant 0 : index
    %3 = vector.load %arg6[%c0, %c0_1] : memref<8x128xf32, #tpu.memory_space<vmem>>, vector<8x128xf32>
    %c0_2 = arith.constant 0 : index
    %c0_3 = arith.constant 0 : index
    %4 = vector.load %arg3[%c0_2, %c0_3] : memref<8x128xf32, #tpu.memory_space<vmem>>, vector<8x128xf32>
    %c0_4 = arith.constant 0 : index
    %c0_5 = arith.constant 0 : index
    %5 = vector.load %arg4[%c0_4, %c0_5] : memref<128x128xf32, #tpu.memory_space<vmem>>, vector<128x128xf32>
    %cst = arith.constant dense<0.000000e+00> : vector<8x128xf32>
    %6 = tpu.matmul %4, %5, %cst {dimension_numbers = #tpu.dot_dimension_numbers<[1], [0], [0], [1], [0, 0, 1, 1], [], []>} : vector<8x128xf32>, vector<128x128xf32>, vector<8x128xf32> -> vector<8x128xf32>
    %7 = arith.addf %3, %6 : vector<8x128xf32>
    %c0_6 = arith.constant 0 : index
    %c0_7 = arith.constant 0 : index
    %8 = vector.load %arg6[%c0_6, %c0_7] : memref<8x128xf32, #tpu.memory_space<vmem>>, vector<8x128xf32>
    tpu.vector_store %arg6[%c0_6, %c0_7], %7 {strides = array<i32>} : memref<8x128xf32, #tpu.memory_space<vmem>>, vector<8x128xf32>,
    %c0_i32_8 = arith.constant 0 : i32
    %9 = arith.cmpi eq, %arg2, %c0_i32_8 : i32
    %10 = arith.extui %9 : i1 to i32
    %c0_i32_9 = arith.constant 0 : i32
    %11 = arith.cmpi ne, %10, %c0_i32_9 : i32
    scf.if %11 {
      %c0_10 = arith.constant 0 : index
      %c0_11 = arith.constant 0 : index
      %12 = vector.load %arg6[%c0_10, %c0_11] : memref<8x128xf32, #tpu.memory_space<vmem>>, vector<8x128xf32>
      %c0_12 = arith.constant 0 : index
      %c0_13 = arith.constant 0 : index
      %13 = vector.load %arg5[%c0_12, %c0_13] : memref<1x128xf32, #tpu.memory_space<vmem>>, vector<1x128xf32>
      %14 = vector.broadcast %13 : vector<1x128xf32> to vector<8x128xf32>
      %15 = arith.addf %12, %14 : vector<8x128xf32>
      %16 = arith.negf %15 : vector<8x128xf32>
      %17 = math.exp %16 : vector<8x128xf32>
      %cst_14 = arith.constant 1.000000e+00 : f32
      %18 = vector.broadcast %cst_14 : f32 to vector<8x128xf32>
      %19 = arith.addf %18, %17 : vector<8x128xf32>
      %20 = arith.divf %18, %19 : vector<8x128xf32>
      %c0_15 = arith.constant 0 : index
      %c0_16 = arith.constant 0 : index
      %21 = vector.load %arg6[%c0_15, %c0_16] : memref<8x128xf32, #tpu.memory_space<vmem>>, vector<8x128xf32>
      tpu.vector_store %arg6[%c0_15, %c0_16], %20 {strides = array<i32>} : memref<8x128xf32, #tpu.memory_space<vmem>>, vector<8x128xf32>,
    } else {
    }
    return
  }
  func.func @transform_0(%arg0: i32, %arg1: i32, %arg2: i32) -> (i32, i32) {
    %c0_i32 = arith.constant 0 : i32
    return %arg1, %arg2 : i32, i32
  }
  func.func @transform_1(%arg0: i32, %arg1: i32, %arg2: i32) -> (i32, i32) {
    %c0_i32 = arith.constant 0 : i32
    return %arg2, %arg0 : i32, i32
  }
  func.func @transform_2(%arg0: i32, %arg1: i32, %arg2: i32) -> (i32, i32) {
    %c0_i32 = arith.constant 0 : i32
    %c0_i32_0 = arith.constant 0 : i32
    return %c0_i32, %arg0 : i32, i32
  }
  func.func @transform_3(%arg0: i32, %arg1: i32, %arg2: i32) -> (i32, i32) {
    %c0_i32 = arith.constant 0 : i32
    return %arg1, %arg0 : i32, i32
  }
}

</mosaic_0001>

<llo_original>
// kernel: _apply.1
$region0: #{_apply.1}
  #allocation0 [shape = 'u32[]', space=smem, size = 0x4, offset = 0x4, fixed_abs, tag = 'smem constant byte address 0x4 - core index']
  #allocation1 [shape = 'u32[144,128]{1,0:T(1,128)}', space=vmem, size = 0x12000, scoped, tag = 'internal scratch']
  %s0 = inlined_call_operand.vmem [shape: f32[8,128], index: 0, kind: input, shape index: {}]
  %s1 = inlined_call_operand.hbm [shape: f32[128,128], index: 1, kind: input, shape index: {}]
  %s2 = inlined_call_operand.vmem [shape: f32[1,128], index: 2, kind: input, shape index: {}]
  %s3 = inlined_call_operand.hbm [shape: f32[8,128], index: 3, kind: output, shape index: {}]
  %s4 = sld [smem:[#allocation0]]
  $region34: #{_apply.1} parent=0
    _
  %s6 = ssub.s32 1, %s4
  %s7 = scalar_select 0, %s6, %s4
  $region1: #{_apply.1} parent=0
    #allocation2 [shape = 'u8[65536]{0}', space=vmem, size = 0x10000, scoped, tag = 'input window, operand 1, single buffered']
    #allocation3 [shape = 's32[1]{0}', space=sflag, size = 0x4, scoped, tag = 'scoped memory for _apply.1']
    #allocation4 [shape = 's32[1]{0}', space=sflag, size = 0x4, scoped, tag = 'scoped memory for _apply.1']
    #allocation5 [shape = 'u8[4096]{0}', space=vmem, size = 0x1000, scoped, tag = 'output window, operand 0, single buffered']
    %8 = vsyncpa [#allocation3], 0
    %9 = vsyncpa [#allocation4], 0
    // Predicated region
    $region2: #{_apply.1} parent=1 // pred_check
      _
    $region3: #{_apply.1} parent=1 // pred_check_branch
      %11 = sbr.rel (0) target = $region5
    $region4: #{_apply.1} parent=1 // pred_region
      _
    $region5: #{_apply.1} parent=1 // pred_fallthru
      _
    // Predicated region
    $region6: #{_apply.1} parent=1 // pred_check
      _
    $region7: #{_apply.1} parent=1 // pred_check_branch
      %13 = sbr.rel (0) target = $region9
    $region8: #{_apply.1} parent=1 // pred_region
      %s15 = ssub.s32 2048, 2048
      %16 = vsyncadd [#allocation3], %s15
      %s17 = sshll.u32 [#allocation2], 4
      %s18 = int_to_ptr.vmem [resolvable:$true] %s17
      %23 = dma.hbm_to_vmem [thread:$0]  %s1, 2048, %s18, [#allocation3], 128, 128, 8
    $region9: #{_apply.1} parent=1 // pred_fallthru
      _
    // Predicated region
    $region10: #{_apply.1} parent=1 // pred_check
      _
    $region11: #{_apply.1} parent=1 // pred_check_branch
      %25 = sbr.rel (0) target = $region13
    $region12: #{_apply.1} parent=1 // pred_region
      _
    $region13: #{_apply.1} parent=1 // pred_fallthru
      _
    // Predicated region
    $region14: #{_apply.1} parent=1 // pred_check
      _
    $region15: #{_apply.1} parent=1 // pred_check_branch
      %27 = sbr.rel (0) target = $region17
    $region16: #{_apply.1} parent=1 // pred_region
      %28 = dma.done [#allocation3], 2048
    $region17: #{_apply.1} parent=1 // pred_fallthru
      _
    %p29 = scmp.eq.s32.totalorder 0, 0
    // Predicated region
    $region18: #{_apply.1} parent=1 // pred_check
      %p30 = pneg %p29
    $region19: #{_apply.1} parent=1 // pred_check_branch
      %32 = sbr.rel (%p30) target = $region21
    $region20: #{_apply.1} parent=1 // pred_region
      %33 = vst [vmem:[#allocation5] sm:$0xff] 0.0
    $region21: #{_apply.1} parent=1 // pred_fallthru
      _
    %v34 = vld [vmem:[#allocation5] sm:$0xff]
    %v35 = vld [vmem:[%s0] sm:$0xff]
    %v36 = vld [vmem:[#allocation2] sm:$0xff]
    %v37 = vld [vmem:[#allocation2 + $0x8] sm:$0xff]
    %v38 = vld [vmem:[#allocation2 + $0x10] sm:$0xff]
    %v39 = vld [vmem:[#allocation2 + $0x18] sm:$0xff]
    %v40 = vld [vmem:[#allocation2 + $0x20] sm:$0xff]
    %v41 = vld [vmem:[#allocation2 + $0x28] sm:$0xff]
    %v42 = vld [vmem:[#allocation2 + $0x30] sm:$0xff]
    %v43 = vld [vmem:[#allocation2 + $0x38] sm:$0xff]
    %v44 = vld [vmem:[#allocation2 + $0x40] sm:$0xff]
    %v45 = vld [vmem:[#allocation2 + $0x48] sm:$0xff]
    %v46 = vld [vmem:[#allocation2 + $0x50] sm:$0xff]
    %v47 = vld [vmem:[#allocation2 + $0x58] sm:$0xff]
    %v48 = vld [vmem:[#allocation2 + $0x60] sm:$0xff]
    %v49 = vld [vmem:[#allocation2 + $0x68] sm:$0xff]
    %v50 = vld [vmem:[#allocation2 + $0x70] sm:$0xff]
    %v51 = vld [vmem:[#allocation2 + $0x78] sm:$0xff]
    %52 = vmatprep.subr.mxu0 0.0
    %53 = vmatpush1.msra.mxu0 %v51
    %54 = vmatprep.subr.mxu0 0.0
    %55 = vmatpush1.msra.mxu0 %v50
    %56 = vmatprep.subr.mxu0 0.0
    %57 = vmatpush1.msra.mxu0 %v49
    %58 = vmatprep.subr.mxu0 0.0
    %59 = vmatpush1.msra.mxu0 %v48
    %60 = vmatprep.subr.mxu0 0.0
    %61 = vmatpush1.msra.mxu0 %v47
    %62 = vmatprep.subr.mxu0 0.0
    %63 = vmatpush1.msra.mxu0 %v46
    %64 = vmatprep.subr.mxu0 0.0
    %65 = vmatpush1.msra.mxu0 %v45
    %66 = vmatprep.subr.mxu0 0.0
    %67 = vmatpush1.msra.mxu0 %v44
    %68 = vmatprep.subr.mxu0 0.0
    %69 = vmatpush1.msra.mxu0 %v43
    %70 = vmatprep.subr.mxu0 0.0
    %71 = vmatpush1.msra.mxu0 %v42
    %72 = vmatprep.subr.mxu0 0.0
    %73 = vmatpush1.msra.mxu0 %v41
    %74 = vmatprep.subr.mxu0 0.0
    %75 = vmatpush1.msra.mxu0 %v40
    %76 = vmatprep.subr.mxu0 0.0
    %77 = vmatpush1.msra.mxu0 %v39
    %78 = vmatprep.subr.mxu0 0.0
    %79 = vmatpush1.msra.mxu0 %v38
    %80 = vmatprep.subr.mxu0 0.0
    %81 = vmatpush1.msra.mxu0 %v37
    %82 = vmatprep.subr.mxu0 0.0
    %83 = vmatpush1.msra.mxu0 %v36
    %84 = vmatprep.subr.mxu0 0.0
    %85 = vmatpush2.msra.mxu0 0.0
    %86 = vmatprep.subr.mxu0 0.0
    %87 = vmatpush2.msra.mxu0 0.0
    %88 = vmatprep.subr.mxu0 0.0
    %89 = vmatpush2.msra.mxu0 0.0
    %90 = vmatprep.subr.mxu0 0.0
    %91 = vmatpush2.msra.mxu0 0.0
    %92 = vmatprep.subr.mxu0 0.0
    %93 = vmatpush2.msra.mxu0 0.0
    %94 = vmatprep.subr.mxu0 0.0
    %95 = vmatpush2.msra.mxu0 0.0
    %96 = vmatprep.subr.mxu0 0.0
    %97 = vmatpush2.msra.mxu0 0.0
    %98 = vmatprep.subr.mxu0 0.0
    %99 = vmatpush2.msra.mxu0 0.0
    %100 = vmatprep.subr.mxu0 0.0
    %101 = vmatpush2.msra.mxu0 0.0
    %102 = vmatprep.subr.mxu0 0.0
    %103 = vmatpush2.msra.mxu0 0.0
    %104 = vmatprep.subr.mxu0 0.0
    %105 = vmatpush2.msra.mxu0 0.0
    %106 = vmatprep.subr.mxu0 0.0
    %107 = vmatpush2.msra.mxu0 0.0
    %108 = vmatprep.subr.mxu0 0.0
    %109 = vmatpush2.msra.mxu0 0.0
    %110 = vmatprep.subr.mxu0 0.0
    %111 = vmatpush2.msra.mxu0 0.0
    %112 = vmatprep.subr.mxu0 0.0
    %113 = vmatpush2.msra.mxu0 0.0
    %114 = vmatprep.subr.mxu0 0.0
    %115 = vmatpush2.msra.mxu0 0.0
    %116 = vmatprep.mubr.f32.mxu0 0.0
    %117 = vmatmul.mubr.f32.gmra.mxu0 %v35
    %v118 = vpop.f32.mrf.mxu0
    %v119 = vadd.f32 0.0, %v118
    %v120 = vpop.f32.mrf.mxu0
    %121 = vdwg.mxu0
    %v122 = vadd.f32 %v34, %v119
    %123 = vst [vmem:[#allocation5] sm:$0xff] %v122
    // Predicated region
    $region22: #{_apply.1} parent=1 // pred_check
      %p124 = pneg %p29
    $region23: #{_apply.1} parent=1 // pred_check_branch
      %126 = sbr.rel (%p124) target = $region25
    $region24: #{_apply.1} parent=1 // pred_region
      %v127 = vld [vmem:[#allocation5] sm:$0xff]
      %v128 = vld [vmem:[%s2] sm:$0x1]
      %v130 = vlaneseq
      %v131 = vshrl.u32 %v130, 7
      %v132 = vsub.s32 0, %v131
      %v133 = vrot.slane %v128, %v132
      %v135 = vadd.f32 %v127, %v133
      %v136 = vxor.u32 %v135, 2147483648
      %v137 = vmul.f32 %v136, 1.442695
      %v138 = vpow.pop %v137
      %v139 = vadd.f32 %v138, 1.0
      %v140 = vrcp.pop %v139
      %v141 = vmul.f32 1.0, %v140
      %142 = vst [vmem:[#allocation5] sm:$0xff] %v141
    $region25: #{_apply.1} parent=1 // pred_fallthru
      _
    // Predicated region
    $region26: #{_apply.1} parent=1 // pred_check
      _
    $region27: #{_apply.1} parent=1 // pred_check_branch
      %144 = sbr.rel (0) target = $region29
    $region28: #{_apply.1} parent=1 // pred_region
      %s146 = ssub.s32 128, 128
      %147 = vsyncadd [#allocation4], %s146
      %s149 = sshll.u32 [#allocation5], 4
      %s150 = int_to_ptr.vmem [resolvable:$true] %s149
      %152 = dma.vmem_to_hbm [thread:$0]  %s150, 128, %s3, [#allocation4]
    $region29: #{_apply.1} parent=1 // pred_fallthru
      _
    // Predicated region
    $region30: #{_apply.1} parent=1 // pred_check
      _
    $region31: #{_apply.1} parent=1 // pred_check_branch
      %154 = sbr.rel (0) target = $region33
    $region32: #{_apply.1} parent=1 // pred_region
      %155 = dma.done [#allocation4], 128
    $region33: #{_apply.1} parent=1 // pred_fallthru
      _
    %156 = vsyncpa [#allocation3], 1
    %157 = vsyncpa [#allocation4], 1

</llo_original>
